<compile_context>
chip_gen: v5e
topology: v5e:2x2
jax: 0.10.0
libtpu: 0.0.40
codegen_flags: <defaults>
</compile_context>

<pallas_src>
import jax
import jax.numpy as jnp
from jax.experimental import pallas as pl
from jax.experimental.pallas import tpu as pltpu

_LANE = 128
_TARGET_BLOCK_BYTES = 2 * 1024 * 1024  # ~2 MiB per array per block


def _round_up(v, m):
    return -(-v // m) * m


def _elementwise_kernel(x_ref, a_ref, b_ref, c_ref, d_ref):
    x = x_ref[...]
    a_ref[...] = x + 2            # weak-typed python ints preserve x.dtype
    b_ref[...] = x - 2
    c_ref[...] = x * 3
    d_ref[...] = (x * 0.5).astype(d_ref.dtype)  # exact x/2; float for int inputs


def _forward_impl(x):
    orig_shape = x.shape
    n = x.size
    dtype = jnp.dtype(x.dtype)
    itemsize = dtype.itemsize

    # torch.div on integer tensors returns float; other outputs keep x.dtype.
    d_dtype = x.dtype if jnp.issubdtype(dtype, jnp.floating) else jnp.float32

    # dtype-aware sublane packing: 8 rows for 4B, 16 for 2B, 32 for 1B dtypes
    sublane = max(8, 32 // itemsize)

    # Lane-dense (rows, 128) slab.  Pad the flat vector only up to the next
    # 128-lane boundary (no-op for the common 128-divisible sizes).
    rows = -(-n // _LANE)
    n_lane = rows * _LANE
    x_flat = jnp.ravel(x)
    if n_lane != n:
        x_flat = jnp.pad(x_flat, (0, n_lane - n))
    x2d = x_flat.reshape(rows, _LANE)

    # ~2 MiB per array per block, and at least two grid steps when the array
    # is big enough, so both v7x TensorCores get work.
    target_rows = max(sublane, _TARGET_BLOCK_BYTES // (_LANE * itemsize))
    if rows <= sublane:
        block_rows = rows                        # full-array block, grid=(1,)
    else:
        half = _round_up(-(-rows // 2), sublane)
        block_rows = min(target_rows, half)

    grid = (pl.cdiv(rows, block_rows),)          # partial last block is masked
    spec = pl.BlockSpec((block_rows, _LANE), lambda i: (i, 0))

    out_shapes = (
        jax.ShapeDtypeStruct((rows, _LANE), x.dtype),
        jax.ShapeDtypeStruct((rows, _LANE), x.dtype),
        jax.ShapeDtypeStruct((rows, _LANE), x.dtype),
        jax.ShapeDtypeStruct((rows, _LANE), d_dtype),
    )

    a2d, b2d, c2d, d2d = pl.pallas_call(
        _elementwise_kernel,
        out_shape=out_shapes,
        grid_spec=pltpu.PrefetchScalarGridSpec(
            num_scalar_prefetch=0,
            grid=grid,
            in_specs=[spec],
            out_specs=[spec, spec, spec, spec],
        ),
        compiler_params=pltpu.CompilerParams(
            dimension_semantics=("parallel",),   # shard grid over v7x's 2 TCs
            vmem_limit_bytes=48 * 1024 * 1024,   # 20 MiB working set + headroom
        ),
    )(x2d)

    if n_lane == n:
        def unpack(y2d):
            return y2d.reshape(orig_shape)
    else:
        def unpack(y2d):
            return y2d.reshape(-1)[:n].reshape(orig_shape)

    return unpack(a2d), unpack(b2d), unpack(c2d), unpack(d2d)


# jit so pad/reshape/slice (when present) fuse with the pallas_call dispatch.
pt_module_forward = jax.jit(_forward_impl)


def _check(x):
    a, b, c, d = pt_module_forward(x)
    jax.block_until_ready((a, b, c, d))
    assert a.shape == x.shape and a.dtype == x.dtype
    assert b.shape == x.shape and b.dtype == x.dtype
    assert c.shape == x.shape and c.dtype == x.dtype
    assert d.shape == x.shape
    assert jnp.allclose(a, x + 2)
    assert jnp.allclose(b, x - 2)
    assert jnp.allclose(c, x * 3)
    assert jnp.allclose(d, x * 0.5)


if __name__ == "__main__":
    key = jax.random.PRNGKey(0)

    # Primary test matching the module's implied small input.
    x = jax.random.normal(key, (2, 4, 16, 16), dtype=jnp.float32)
    _check(x)

    # Non-128-divisible + partial-last-block path (masked last block).
    k1, k2 = jax.random.split(key)
    _check(jax.random.normal(k1, (5000,), dtype=jnp.float32))

    # bf16 path (dtype-aware sublane packing / block size).
    _check(jax.random.normal(k2, (4, 1000), dtype=jnp.bfloat16))

    print("KERNEL_OK")
</pallas_src>

<mosaic_0001>
module attributes {stable_mosaic.version = 11 : i64} {
  func.func @_elementwise_kernel(%arg0: i32, %arg1: memref<8x128xf32, #tpu.memory_space<vmem>>, %arg2: memref<8x128xf32, #tpu.memory_space<vmem>>, %arg3: memref<8x128xf32, #tpu.memory_space<vmem>>, %arg4: memref<8x128xf32, #tpu.memory_space<vmem>>, %arg5: memref<8x128xf32, #tpu.memory_space<vmem>>) attributes {dimension_semantics = [#tpu.dimension_semantics<parallel>], iteration_bounds = array<i64: 2>, scalar_prefetch = 0 : i64, scratch_operands = 0 : i64, tpu.core_type = #tpu.core_type<tc>, window_params = [{transform_indices = @transform_0, window_bounds = array<i64: 8, 128>}, {transform_indices = @transform_1, window_bounds = array<i64: 8, 128>}, {transform_indices = @transform_2, window_bounds = array<i64: 8, 128>}, {transform_indices = @transform_3, window_bounds = array<i64: 8, 128>}, {transform_indices = @transform_4, window_bounds = array<i64: 8, 128>}]} {
    %c0 = arith.constant 0 : index
    %c0_0 = arith.constant 0 : index
    %0 = vector.load %arg1[%c0, %c0_0] : memref<8x128xf32, #tpu.memory_space<vmem>>, vector<8x128xf32>
    %cst = arith.constant 2.000000e+00 : f32
    %1 = vector.broadcast %cst : f32 to vector<8x128xf32>
    %2 = arith.addf %0, %1 : vector<8x128xf32>
    %c0_1 = arith.constant 0 : index
    %c0_2 = arith.constant 0 : index
    %3 = vector.load %arg2[%c0_1, %c0_2] : memref<8x128xf32, #tpu.memory_space<vmem>>, vector<8x128xf32>
    tpu.vector_store %arg2[%c0_1, %c0_2], %2 {strides = array<i32>} : memref<8x128xf32, #tpu.memory_space<vmem>>, vector<8x128xf32>,
    %cst_3 = arith.constant 2.000000e+00 : f32
    %4 = vector.broadcast %cst_3 : f32 to vector<8x128xf32>
    %5 = arith.subf %0, %4 : vector<8x128xf32>
    %c0_4 = arith.constant 0 : index
    %c0_5 = arith.constant 0 : index
    %6 = vector.load %arg3[%c0_4, %c0_5] : memref<8x128xf32, #tpu.memory_space<vmem>>, vector<8x128xf32>
    tpu.vector_store %arg3[%c0_4, %c0_5], %5 {strides = array<i32>} : memref<8x128xf32, #tpu.memory_space<vmem>>, vector<8x128xf32>,
    %cst_6 = arith.constant 3.000000e+00 : f32
    %7 = vector.broadcast %cst_6 : f32 to vector<8x128xf32>
    %8 = arith.mulf %0, %7 : vector<8x128xf32>
    %c0_7 = arith.constant 0 : index
    %c0_8 = arith.constant 0 : index
    %9 = vector.load %arg4[%c0_7, %c0_8] : memref<8x128xf32, #tpu.memory_space<vmem>>, vector<8x128xf32>
    tpu.vector_store %arg4[%c0_7, %c0_8], %8 {strides = array<i32>} : memref<8x128xf32, #tpu.memory_space<vmem>>, vector<8x128xf32>,
    %cst_9 = arith.constant 5.000000e-01 : f32
    %10 = vector.broadcast %cst_9 : f32 to vector<8x128xf32>
    %11 = arith.mulf %0, %10 : vector<8x128xf32>
    %c0_10 = arith.constant 0 : index
    %c0_11 = arith.constant 0 : index
    %12 = vector.load %arg5[%c0_10, %c0_11] : memref<8x128xf32, #tpu.memory_space<vmem>>, vector<8x128xf32>
    tpu.vector_store %arg5[%c0_10, %c0_11], %11 {strides = array<i32>} : memref<8x128xf32, #tpu.memory_space<vmem>>, vector<8x128xf32>,
    return
  }
  func.func @transform_0(%arg0: i32) -> (i32, i32) {
    %c0_i32 = arith.constant 0 : i32
    %c0_i32_0 = arith.constant 0 : i32
    return %arg0, %c0_i32 : i32, i32
  }
  func.func @transform_1(%arg0: i32) -> (i32, i32) {
    %c0_i32 = arith.constant 0 : i32
    %c0_i32_0 = arith.constant 0 : i32
    return %arg0, %c0_i32 : i32, i32
  }
  func.func @transform_2(%arg0: i32) -> (i32, i32) {
    %c0_i32 = arith.constant 0 : i32
    %c0_i32_0 = arith.constant 0 : i32
    return %arg0, %c0_i32 : i32, i32
  }
  func.func @transform_3(%arg0: i32) -> (i32, i32) {
    %c0_i32 = arith.constant 0 : i32
    %c0_i32_0 = arith.constant 0 : i32
    return %arg0, %c0_i32 : i32, i32
  }
  func.func @transform_4(%arg0: i32) -> (i32, i32) {
    %c0_i32 = arith.constant 0 : i32
    %c0_i32_0 = arith.constant 0 : i32
    return %arg0, %c0_i32 : i32, i32
  }
}

</mosaic_0001>

<llo_original>
// kernel: _forward_impl.1
$region0: #{_forward_impl.1}
  #allocation0 [shape = 'u32[]', space=smem, size = 0x4, offset = 0x4, fixed_abs, tag = 'smem constant byte address 0x4 - core index']
  #allocation1 [shape = 'u32[72,128]{1,0:T(1,128)}', space=vmem, size = 0x9000, scoped, tag = 'internal scratch']
  %s0 = inlined_call_operand.vmem [shape: f32[16,128], index: 0, kind: input, shape index: {}]
  %s1 = inlined_call_operand.vmem [shape: f32[16,128], index: 1, kind: output, shape index: {0}]
  %s2 = inlined_call_operand.vmem [shape: f32[16,128], index: 2, kind: output, shape index: {1}]
  %s3 = inlined_call_operand.vmem [shape: f32[16,128], index: 3, kind: output, shape index: {2}]
  %s4 = inlined_call_operand.vmem [shape: f32[16,128], index: 4, kind: output, shape index: {3}]
  %5 = xla_tuple %s1, %s2, %s3, %s4
  %s6 = sld [smem:[#allocation0]]
  $region61: #{_forward_impl.1} parent=0
    _
  %s8 = ssub.s32 1, %s6
  %s9 = scalar_select 0, %s8, %s6
  loop: start=0, step=1, limit=4
  $region2: #{_forward_impl.1} parent=0 // loop_pre_header
    _
  $region3: #{_forward_impl.1} parent=0 // loop_header
    %s11 = sphi 0, %s15
    %p12 = scmp.ge.s32.totalorder %s11, 4
    %s21 = sphi 0, %s23
    %s24 = sphi 0, %s21
    %s25 = sphi 0, %s24
    %s41 = sphi 0, %s25
    %s47 = sphi 0, %s49
    %s50 = sphi 0, %s47
    %s51 = sphi 0, %s50
    %s67 = sphi 0, %s51
    %s73 = sphi 0, %s75
    %s76 = sphi 0, %s73
    %s77 = sphi 0, %s76
    %s93 = sphi 0, %s77
    %s99 = sphi 0, %s101
    %s102 = sphi 0, %s99
    %s103 = sphi 0, %s102
    %s119 = sphi 0, %s103
    %s125 = sphi 0, %s127
    %s128 = sphi 0, %s125
    %s129 = sphi 0, %s128
    %s145 = sphi 0, %s129
  $region4: #{_forward_impl.1} parent=0 // loop_header_branch
    %14 = sbr.rel (%p12) target = $region8
  $region5: #{_forward_impl.1} parent=0 // loop_body
    %s16 = ssub.s32 %s11, 1
    %s17 = ssub.s32 %s11, 2
    %s18 = sadd.s32 %s11, 1
    %s19 = ssub.s32 %s11, %s18
    %p20 = scmp.eq.s32.totalorder %s19, 0
    %s22 = sadd.s32 %s21, 1
    %s23 = scalar_select %p20, %s21, %s22
    %p26 = pneg %p20
    %p27 = scmp.eq.s32.totalorder %s11, 1
    %p28 = por %p26, %p27
    %p29 = scmp.ne.s32.totalorder %s21, %s24
    %p30 = scmp.eq.s32.totalorder %s11, 0
    %p31 = por %p29, %p30
    %p32 = scmp.ne.s32.totalorder %s21, %s24
    %p33 = scmp.eq.s32.totalorder %s16, 1
    %p34 = por %p32, %p33
    %p35 = scmp.ne.s32.totalorder %s24, %s25
    %p36 = scmp.eq.s32.totalorder %s16, 0
    %p37 = por %p35, %p36
    %p38 = scmp.ne.s32.totalorder %s24, %s25
    %p39 = scmp.eq.s32.totalorder %s17, 1
    %p40 = por %p38, %p39
    %p42 = scmp.ne.s32.totalorder %s25, %s41
    %p43 = scmp.eq.s32.totalorder %s17, 0
    %p44 = por %p42, %p43
    %s45 = ssub.s32 %s11, %s18
    %p46 = scmp.eq.s32.totalorder %s45, 0
    %s48 = sadd.s32 %s47, 1
    %s49 = scalar_select %p46, %s47, %s48
    %p52 = pneg %p46
    %p53 = scmp.eq.s32.totalorder %s11, 1
    %p54 = por %p52, %p53
    %p55 = scmp.ne.s32.totalorder %s47, %s50
    %p56 = scmp.eq.s32.totalorder %s11, 0
    %p57 = por %p55, %p56
    %p58 = scmp.ne.s32.totalorder %s47, %s50
    %p59 = scmp.eq.s32.totalorder %s16, 1
    %p60 = por %p58, %p59
    %p61 = scmp.ne.s32.totalorder %s50, %s51
    %p62 = scmp.eq.s32.totalorder %s16, 0
    %p63 = por %p61, %p62
    %p64 = scmp.ne.s32.totalorder %s50, %s51
    %p65 = scmp.eq.s32.totalorder %s17, 1
    %p66 = por %p64, %p65
    %p68 = scmp.ne.s32.totalorder %s51, %s67
    %p69 = scmp.eq.s32.totalorder %s17, 0
    %p70 = por %p68, %p69
    %s71 = ssub.s32 %s11, %s18
    %p72 = scmp.eq.s32.totalorder %s71, 0
    %s74 = sadd.s32 %s73, 1
    %s75 = scalar_select %p72, %s73, %s74
    %p78 = pneg %p72
    %p79 = scmp.eq.s32.totalorder %s11, 1
    %p80 = por %p78, %p79
    %p81 = scmp.ne.s32.totalorder %s73, %s76
    %p82 = scmp.eq.s32.totalorder %s11, 0
    %p83 = por %p81, %p82
    %p84 = scmp.ne.s32.totalorder %s73, %s76
    %p85 = scmp.eq.s32.totalorder %s16, 1
    %p86 = por %p84, %p85
    %p87 = scmp.ne.s32.totalorder %s76, %s77
    %p88 = scmp.eq.s32.totalorder %s16, 0
    %p89 = por %p87, %p88
    %p90 = scmp.ne.s32.totalorder %s76, %s77
    %p91 = scmp.eq.s32.totalorder %s17, 1
    %p92 = por %p90, %p91
    %p94 = scmp.ne.s32.totalorder %s77, %s93
    %p95 = scmp.eq.s32.totalorder %s17, 0
    %p96 = por %p94, %p95
    %s97 = ssub.s32 %s11, %s18
    %p98 = scmp.eq.s32.totalorder %s97, 0
    %s100 = sadd.s32 %s99, 1
    %s101 = scalar_select %p98, %s99, %s100
    %p104 = pneg %p98
    %p105 = scmp.eq.s32.totalorder %s11, 1
    %p106 = por %p104, %p105
    %p107 = scmp.ne.s32.totalorder %s99, %s102
    %p108 = scmp.eq.s32.totalorder %s11, 0
    %p109 = por %p107, %p108
    %p110 = scmp.ne.s32.totalorder %s99, %s102
    %p111 = scmp.eq.s32.totalorder %s16, 1
    %p112 = por %p110, %p111
    %p113 = scmp.ne.s32.totalorder %s102, %s103
    %p114 = scmp.eq.s32.totalorder %s16, 0
    %p115 = por %p113, %p114
    %p116 = scmp.ne.s32.totalorder %s102, %s103
    %p117 = scmp.eq.s32.totalorder %s17, 1
    %p118 = por %p116, %p117
    %p120 = scmp.ne.s32.totalorder %s103, %s119
    %p121 = scmp.eq.s32.totalorder %s17, 0
    %p122 = por %p120, %p121
    %s123 = ssub.s32 %s11, %s18
    %p124 = scmp.eq.s32.totalorder %s123, 0
    %s126 = sadd.s32 %s125, 1
    %s127 = scalar_select %p124, %s125, %s126
    %p130 = pneg %p124
    %p131 = scmp.eq.s32.totalorder %s11, 1
    %p132 = por %p130, %p131
    %p133 = scmp.ne.s32.totalorder %s125, %s128
    %p134 = scmp.eq.s32.totalorder %s11, 0
    %p135 = por %p133, %p134
    %p136 = scmp.ne.s32.totalorder %s125, %s128
    %p137 = scmp.eq.s32.totalorder %s16, 1
    %p138 = por %p136, %p137
    %p139 = scmp.ne.s32.totalorder %s128, %s129
    %p140 = scmp.eq.s32.totalorder %s16, 0
    %p141 = por %p139, %p140
    %p142 = scmp.ne.s32.totalorder %s128, %s129
    %p143 = scmp.eq.s32.totalorder %s17, 1
    %p144 = por %p142, %p143
    %p146 = scmp.ne.s32.totalorder %s129, %s145
    %p147 = scmp.eq.s32.totalorder %s17, 0
    %p148 = por %p146, %p147
    %p149 = scmp.le.s32.totalorder 1, %s11
    %p150 = scmp.lt.s32.totalorder %s11, 3
    %p151 = pnand %p149, %p150
    %p152 = pneg %p151
    // Predicated region
    $region9: #{_forward_impl.1} parent=5 // pred_check
      _
    $region10: #{_forward_impl.1} parent=5 // pred_check_branch
      %154 = sbr.rel (%p151) target = $region12
    $region11: #{_forward_impl.1} parent=5 // pred_region
      %s155 = ssub.s32 %s11, 1
    $region12: #{_forward_impl.1} parent=5 // pred_fallthru
      _
    %p156 = scmp.lt.s32.totalorder %s11, 2
    // Predicated region
    $region13: #{_forward_impl.1} parent=5 // pred_check
      %p157 = pneg %p156
    $region14: #{_forward_impl.1} parent=5 // pred_check_branch
      %159 = sbr.rel (%p157) target = $region16
    $region15: #{_forward_impl.1} parent=5 // pred_region
      // Predicated region
      $region17: #{_forward_impl.1} parent=15 // pred_check
        %p160 = pneg %p31
      $region18: #{_forward_impl.1} parent=15 // pred_check_branch
        %162 = sbr.rel (%p160) target = $region20
      $region19: #{_forward_impl.1} parent=15 // pred_region
        %p163 = scmp.lt.s32.totalorder %s11, 1
        %s164 = scalar_select %p163, %s11, 1
        %s165 = smul.addr %s164, 8
        %s166 = scalar_lea.vmem %s0, %s165
      $region20: #{_forward_impl.1} parent=15 // pred_fallthru
        _
    $region16: #{_forward_impl.1} parent=5 // pred_fallthru
      _
    %p167 = scmp.le.s32.totalorder 1, %s11
    %p168 = scmp.lt.s32.totalorder %s11, 3
    %p169 = pnand %p167, %p168
    %p170 = pneg %p169
    // Predicated region
    $region21: #{_forward_impl.1} parent=5 // pred_check
      _
    $region22: #{_forward_impl.1} parent=5 // pred_check_branch
      %172 = sbr.rel (%p169) target = $region24
    $region23: #{_forward_impl.1} parent=5 // pred_region
      %s173 = ssub.s32 %s11, 1
      %p174 = scmp.lt.s32.totalorder %s16, 1
      %s175 = scalar_select %p174, %s16, 1
      %s176 = smul.addr %s175, 8
      %s177 = scalar_lea.vmem %s0, %s176
      %p178 = pneg %p37
      %p179 = pneg %p34
      %p180 = pneg %p63
      %p181 = pneg %p60
      %p182 = scmp.lt.s32.totalorder %s16, 1
      %s183 = scalar_select %p182, %s16, 1
      %s184 = smul.addr %s183, 8
      %s185 = scalar_lea.vmem %s1, %s184
      %p186 = pneg %p89
      %p187 = pneg %p86
      %p188 = scmp.lt.s32.totalorder %s16, 1
      %s189 = scalar_select %p188, %s16, 1
      %s190 = smul.addr %s189, 8
      %s191 = scalar_lea.vmem %s2, %s190
      %p192 = pneg %p115
      %p193 = pneg %p112
      %p194 = scmp.lt.s32.totalorder %s16, 1
      %s195 = scalar_select %p194, %s16, 1
      %s196 = smul.addr %s195, 8
      %s197 = scalar_lea.vmem %s3, %s196
      %p198 = pneg %p141
      %p199 = pneg %p138
      %p200 = scmp.lt.s32.totalorder %s16, 1
      %s201 = scalar_select %p200, %s16, 1
      %s202 = smul.addr %s201, 8
      %s203 = scalar_lea.vmem %s4, %s202
      %p204 = scmp.lt.s32.totalorder %s16, 1
      %s205 = scalar_select %p204, %s16, 1
      %s206 = smul.addr %s205, 8
      %s207 = scalar_lea.vmem %s0, %s206
      %p208 = scmp.lt.s32.totalorder %s16, 1
      %s209 = scalar_select %p208, %s16, 1
      %s210 = smul.addr %s209, 8
      %s211 = scalar_lea.vmem %s1, %s210
      %p212 = scmp.lt.s32.totalorder %s16, 1
      %s213 = scalar_select %p212, %s16, 1
      %s214 = smul.addr %s213, 8
      %s215 = scalar_lea.vmem %s2, %s214
      %p216 = scmp.lt.s32.totalorder %s16, 1
      %s217 = scalar_select %p216, %s16, 1
      %s218 = smul.addr %s217, 8
      %s219 = scalar_lea.vmem %s3, %s218
      %p220 = scmp.lt.s32.totalorder %s16, 1
      %s221 = scalar_select %p220, %s16, 1
      %s222 = smul.addr %s221, 8
      %s223 = scalar_lea.vmem %s4, %s222
      %v224 = vld [vmem:[%s207] sm:$0xff]
      %v225 = vadd.f32 %v224, 2.0
      %226 = vst [vmem:[%s211] sm:$0xff] %v225
      %v227 = vsub.f32 %v224, 2.0
      %228 = vst [vmem:[%s215] sm:$0xff] %v227
      %v229 = vmul.f32 %v224, 3.0
      %230 = vst [vmem:[%s219] sm:$0xff] %v229
      %v231 = vmul.f32 %v224, 0.5
      %232 = vst [vmem:[%s223] sm:$0xff] %v231
      %p233 = scmp.lt.s32.totalorder %s16, 1
      %s234 = scalar_select %p233, %s16, 1
      %s235 = smul.addr %s234, 8
      %s236 = scalar_lea.vmem %s1, %s235
      %p237 = scmp.lt.s32.totalorder %s16, 1
      %s238 = scalar_select %p237, %s16, 1
      %s239 = smul.addr %s238, 8
      %s240 = scalar_lea.vmem %s2, %s239
      %p241 = scmp.lt.s32.totalorder %s16, 1
      %s242 = scalar_select %p241, %s16, 1
      %s243 = smul.addr %s242, 8
      %s244 = scalar_lea.vmem %s3, %s243
      %p245 = scmp.lt.s32.totalorder %s16, 1
      %s246 = scalar_select %p245, %s16, 1
      %s247 = smul.addr %s246, 8
      %s248 = scalar_lea.vmem %s4, %s247
      // Predicated region
      $region25: #{_forward_impl.1} parent=23 // pred_check
        %p249 = pneg %p60
      $region26: #{_forward_impl.1} parent=23 // pred_check_branch
        %251 = sbr.rel (%p249) target = $region28
      $region27: #{_forward_impl.1} parent=23 // pred_region
        _
      $region28: #{_forward_impl.1} parent=23 // pred_fallthru
        _
      // Predicated region
      $region29: #{_forward_impl.1} parent=23 // pred_check
        %p252 = pneg %p86
      $region30: #{_forward_impl.1} parent=23 // pred_check_branch
        %254 = sbr.rel (%p252) target = $region32
      $region31: #{_forward_impl.1} parent=23 // pred_region
        _
      $region32: #{_forward_impl.1} parent=23 // pred_fallthru
        _
      // Predicated region
      $region33: #{_forward_impl.1} parent=23 // pred_check
        %p255 = pneg %p112
      $region34: #{_forward_impl.1} parent=23 // pred_check_branch
        %257 = sbr.rel (%p255) target = $region36
      $region35: #{_forward_impl.1} parent=23 // pred_region
        _
      $region36: #{_forward_impl.1} parent=23 // pred_fallthru
        _
      // Predicated region
      $region37: #{_forward_impl.1} parent=23 // pred_check
        %p258 = pneg %p138
      $region38: #{_forward_impl.1} parent=23 // pred_check_branch
        %260 = sbr.rel (%p258) target = $region40
      $region39: #{_forward_impl.1} parent=23 // pred_region
        _
      $region40: #{_forward_impl.1} parent=23 // pred_fallthru
        _
    $region24: #{_forward_impl.1} parent=5 // pred_fallthru
      _
    %p261 = scmp.le.s32.totalorder 2, %s11
    // Predicated region
    $region41: #{_forward_impl.1} parent=5 // pred_check
      %p262 = pneg %p261
    $region42: #{_forward_impl.1} parent=5 // pred_check_branch
      %264 = sbr.rel (%p262) target = $region44
    $region43: #{_forward_impl.1} parent=5 // pred_region
      %s265 = ssub.s32 %s11, 2
      // Predicated region
      $region45: #{_forward_impl.1} parent=43 // pred_check
        %p266 = pneg %p66
      $region46: #{_forward_impl.1} parent=43 // pred_check_branch
        %268 = sbr.rel (%p266) target = $region48
      $region47: #{_forward_impl.1} parent=43 // pred_region
        %p269 = scmp.lt.s32.totalorder %s17, 1
        %s270 = scalar_select %p269, %s17, 1
        %s271 = smul.addr %s270, 8
        %s272 = scalar_lea.vmem %s1, %s271
      $region48: #{_forward_impl.1} parent=43 // pred_fallthru
        _
      // Predicated region
      $region49: #{_forward_impl.1} parent=43 // pred_check
        %p273 = pneg %p92
      $region50: #{_forward_impl.1} parent=43 // pred_check_branch
        %275 = sbr.rel (%p273) target = $region52
      $region51: #{_forward_impl.1} parent=43 // pred_region
        %p276 = scmp.lt.s32.totalorder %s17, 1
        %s277 = scalar_select %p276, %s17, 1
        %s278 = smul.addr %s277, 8
        %s279 = scalar_lea.vmem %s2, %s278
      $region52: #{_forward_impl.1} parent=43 // pred_fallthru
        _
      // Predicated region
      $region53: #{_forward_impl.1} parent=43 // pred_check
        %p280 = pneg %p118
      $region54: #{_forward_impl.1} parent=43 // pred_check_branch
        %282 = sbr.rel (%p280) target = $region56
      $region55: #{_forward_impl.1} parent=43 // pred_region
        %p283 = scmp.lt.s32.totalorder %s17, 1
        %s284 = scalar_select %p283, %s17, 1
        %s285 = smul.addr %s284, 8
        %s286 = scalar_lea.vmem %s3, %s285
      $region56: #{_forward_impl.1} parent=43 // pred_fallthru
        _
      // Predicated region
      $region57: #{_forward_impl.1} parent=43 // pred_check
        %p287 = pneg %p144
      $region58: #{_forward_impl.1} parent=43 // pred_check_branch
        %289 = sbr.rel (%p287) target = $region60
      $region59: #{_forward_impl.1} parent=43 // pred_region
        %p290 = scmp.lt.s32.totalorder %s17, 1
        %s291 = scalar_select %p290, %s17, 1
        %s292 = smul.addr %s291, 8
        %s293 = scalar_lea.vmem %s4, %s292
      $region60: #{_forward_impl.1} parent=43 // pred_fallthru
        _
    $region44: #{_forward_impl.1} parent=5 // pred_fallthru
      _
  $region6: #{_forward_impl.1} parent=0 // loop_footer
    %s15 = sadd.s32 1, %s11
  $region7: #{_forward_impl.1} parent=0 // loop_footer_branch
    %10 = sbr.rel target = $region3
  $region8: #{_forward_impl.1} parent=0 // loop_exit
    _

</llo_original>
